<compile_context>
chip_gen: v7x
topology: tpu7x:2x2x1
jax: 0.10.0
libtpu: 0.0.40
codegen_flags: <defaults>
</compile_context>

<pallas_src>
import jax
import jax.numpy as jnp
from jax import lax
from jax.experimental import pallas as pl
from jax.experimental.pallas import tpu as pltpu  # noqa: F401  (TPU backend)

# ---------------- configuration (small synthetic encoder) -------------------
B = 2        # batch
S = 8        # sequence length
H = 32       # hidden size
NH = 4       # attention heads
DH = H // NH # head dim
FF = 4 * H   # FFN intermediate size (== 128, lane-dense)
VOCAB = 100  # synthetic vocab
LN_EPS = 1e-12
LANES = 4 * H  # 128 — lane width of the packed slabs


# ---------------------------- kernel helpers --------------------------------
def _layernorm(x, g, b):
    mu = jnp.mean(x, axis=-1, keepdims=True)
    var = jnp.mean((x - mu) ** 2, axis=-1, keepdims=True)
    return (x - mu) * lax.rsqrt(var + LN_EPS) * g + b


def _gelu(x):
    # tanh approximation (EUP-friendly), f32
    return 0.5 * x * (1.0 + jnp.tanh(0.7978845608028654 * (x + 0.044715 * x * x * x)))


# ------------------------------- kernel -------------------------------------
def encoder_cls_kernel(x_ref, w_ref, v_ref, out_ref):
    """Single-invocation encoder + classifier head.

    x_ref : (B*S, H)        f32   token embeddings, batch folded into sublanes
    w_ref : (2H+FF+H, 128)  bf16  [Wq|Wk|Wv|Wo] ; W1 ; W2(pad) ; head-group M(pad)
    v_ref : (4+B*S, 128)    f32   [bq|bk|bv|bo] ; b1 ; LN params ; b2|wc|bc ; mask rows
    out   : (B, 1)          f32   logits
    """
    x = x_ref[...]                                                    # (16, 32) f32

    # ---- pre-packed bf16 weights (lane-dense, pre-cast host-side) ----------
    w_qkvo = w_ref[0:H, :]                                            # (32, 128)
    w1     = w_ref[H:2 * H, :]                                        # (32, 128)
    w2     = w_ref[2 * H:2 * H + FF, :]                               # (128, 128), cols >= H zero
    m_blk  = w_ref[2 * H + FF:2 * H + FF + H, 0:H]                    # (32, 32) 0/1 head-group

    # ---- f32 vectors --------------------------------------------------------
    b_qkvo = v_ref[0:1, :]                                            # (1, 128) [bq|bk|bv|bo]
    b1     = v_ref[1:2, :]                                            # (1, 128)
    ln1_g  = v_ref[2:3, 0:H]
    ln1_b  = v_ref[2:3, H:2 * H]
    ln2_g  = v_ref[2:3, 2 * H:3 * H]
    ln2_b  = v_ref[2:3, 3 * H:4 * H]
    b2     = v_ref[3:4, 0:H]
    wc_row = v_ref[3:4, H:2 * H]                                      # classifier weights (1, H)
    bc     = v_ref[3:4, 2 * H:2 * H + 1]                              # (1, 1)
    mask   = v_ref[4:4 + B * S, 0:1]                                  # (B*S, 1) additive bias

    # ---- fused Q|K|V(|O) projection: ONE MXU pass over all B*S rows --------
    proj = jnp.dot(x.astype(jnp.bfloat16), w_qkvo,
                   preferred_element_type=jnp.float32) + b_qkvo       # (16, 128)
    q_all = proj[:, 0:H]                                              # (16, 32)
    k_all = proj[:, H:2 * H]
    v_all = proj[:, 2 * H:3 * H]                                      # lanes 3H:4H unused

    # ---- attention scores for the CLS query of every batch, all heads ------
    # q_rep[b*S+j, :] = q of CLS token of batch b
    q_cls3 = q_all.reshape(B, S, H)[:, 0:1, :]                        # (B, 1, H)
    q_rep = jnp.broadcast_to(q_cls3, (B, S, H)).reshape(B * S, H)     # (16, 32)
    prod = (k_all * q_rep).astype(jnp.bfloat16)                       # (16, 32)
    scale = DH ** -0.5
    # m_blk sums each head's DH lanes and replicates the score across them.
    s = jnp.dot(prod, m_blk, preferred_element_type=jnp.float32) * scale + mask   # (16, 32)

    # softmax over the key axis (sublanes within each batch); per-head score is
    # replicated across that head's DH lanes so the lane-wise softmax is exact.
    s3 = s.reshape(B, S, H)
    s3 = s3 - jnp.max(s3, axis=1, keepdims=True)
    p3 = jnp.exp(s3)
    p3 = p3 * pl.reciprocal(jnp.sum(p3, axis=1, keepdims=True), approx=False)
    ctx = jnp.sum(p3 * v_all.reshape(B, S, H), axis=1)                # (B, H), head-major lanes

    # ---- attention output projection + residual + LN1 ----------------------
    w_o = w_qkvo[:, 3 * H:4 * H]                                      # (H, H) bf16
    bo  = b_qkvo[:, 3 * H:4 * H]                                      # (1, H)
    attn = jnp.dot(ctx.astype(jnp.bfloat16), w_o,
                   preferred_element_type=jnp.float32) + bo           # (B, H)
    x_cls = x.reshape(B, S, H)[:, 0, :]                               # (B, H)
    x1 = _layernorm(x_cls + attn, ln1_g, ln1_b)                       # (B, H)

    # ---- FFN on both CLS rows at once + residual + LN2 ---------------------
    hdn = _gelu(jnp.dot(x1.astype(jnp.bfloat16), w1,
                        preferred_element_type=jnp.float32) + b1)     # (B, FF)
    ffn = jnp.dot(hdn.astype(jnp.bfloat16), w2,
                  preferred_element_type=jnp.float32)[:, 0:H] + b2    # (B, H)
    x2 = _layernorm(x1 + ffn, ln2_g, ln2_b)                           # (B, H)

    # ---- classifier head: Linear(H, 1) on CLS, single store -----------------
    out_ref[...] = jnp.sum(x2 * wc_row, axis=-1, keepdims=True) + bc  # (B, 1)


# --------------------- one-time host-side weight packing ---------------------
def pack_weights(params):
    """Pre-cast all MXU weights to bf16 and pack them lane-dense (128 wide).

    Called ONCE at init time (outside the per-call forward path).
    """
    wqkvo = jnp.concatenate(
        [params["wq"], params["wk"], params["wv"], params["wo"]], axis=1)        # (H, 128)
    w2_pad = jnp.zeros((FF, LANES), jnp.float32).at[:, 0:H].set(params["w2"])    # (FF, 128)
    head_id = jnp.arange(H) // DH
    m_blk = (head_id[:, None] == head_id[None, :]).astype(jnp.float32)           # (H, H) 0/1
    m_blk_pad = jnp.zeros((H, LANES), jnp.float32).at[:, 0:H].set(m_blk)
    wslab = jnp.concatenate([wqkvo, params["w1"], w2_pad, m_blk_pad],
                            axis=0).astype(jnp.bfloat16)                         # (224, 128) bf16

    vrows = jnp.zeros((4, LANES), jnp.float32)
    vrows = vrows.at[0:1, :].set(jnp.concatenate(
        [params["bq"], params["bk"], params["bv"], params["bo"]], axis=1))       # row 0
    vrows = vrows.at[1:2, :].set(params["b1"])                                   # row 1
    vrows = vrows.at[2:3, :].set(jnp.concatenate(
        [params["ln1_g"], params["ln1_b"], params["ln2_g"], params["ln2_b"]], axis=1))
    vrows = vrows.at[3, 0:H].set(params["b2"][0])
    vrows = vrows.at[3, H:2 * H].set(params["wc"][:, 0])
    vrows = vrows.at[3, 2 * H].set(params["bc"][0, 0])                           # row 3
    return wslab, vrows


# ------------------------------ wrapper --------------------------------------
def changepoint_norms_classifier(input_ids, attention_mask, params, packed):
    """Forward pass: synthetic encoder + Linear(H, 1) on CLS.  Returns (B, 1)."""
    wslab, vrows = packed
    # Glue: embedding gather + per-call mask rows (trace-time, tiny).
    x = params["word_emb"][input_ids] + params["pos_emb"][None, :, :]            # (B, S, H)
    x_all = x.reshape(B * S, H).astype(jnp.float32)
    mask_bias = (1.0 - attention_mask.astype(jnp.float32)) * -1e9                # (B, S)
    mask_rows = jnp.zeros((B * S, LANES), jnp.float32).at[:, 0].set(
        mask_bias.reshape(B * S))
    vslab = jnp.concatenate([vrows, mask_rows], axis=0)                          # (4+B*S, 128)

    # single invocation: no grid, 3 operands, whole (tiny) slabs resident in VMEM
    out = pl.pallas_call(
        encoder_cls_kernel,
        out_shape=jax.ShapeDtypeStruct((B, 1), jnp.float32),
    )(x_all, wslab, vslab)
    return out   # logits, matching nn.Linear(hidden, 1) output on [CLS]


# ------------------------ pure-JAX reference ---------------------------------
def reference_forward(input_ids, attention_mask, params):
    x = params["word_emb"][input_ids] + params["pos_emb"][None, :, :]
    x = x.astype(jnp.float32)
    mask_bias = ((1.0 - attention_mask.astype(jnp.float32)) * -1e9)[:, None, :]
    P = lax.Precision.HIGHEST

    def ln(y, g, b):
        mu = jnp.mean(y, -1, keepdims=True)
        var = jnp.mean((y - mu) ** 2, -1, keepdims=True)
        return (y - mu) * lax.rsqrt(var + LN_EPS) * g + b

    q = jnp.einsum("bsh,hk->bsk", x, params["wq"], precision=P) + params["bq"]
    k = jnp.einsum("bsh,hk->bsk", x, params["wk"], precision=P) + params["bk"]
    v = jnp.einsum("bsh,hk->bsk", x, params["wv"], precision=P) + params["bv"]
    q = q.reshape(B, S, NH, DH); k = k.reshape(B, S, NH, DH); v = v.reshape(B, S, NH, DH)
    s = jnp.einsum("bqnd,bknd->bnqk", q, k, precision=P) / jnp.sqrt(jnp.float32(DH))
    s = s + mask_bias[:, None, :, :]
    p = jax.nn.softmax(s, axis=-1)
    ctx = jnp.einsum("bnqk,bknd->bqnd", p, v, precision=P).reshape(B, S, H)
    attn = jnp.einsum("bsh,hk->bsk", ctx, params["wo"], precision=P) + params["bo"]
    x1 = ln(x + attn, params["ln1_g"], params["ln1_b"])
    hdn = jnp.einsum("bsh,hf->bsf", x1, params["w1"], precision=P) + params["b1"]
    hdn = 0.5 * hdn * (1.0 + jnp.tanh(0.7978845608028654 * (hdn + 0.044715 * hdn ** 3)))
    ffn = jnp.einsum("bsf,fh->bsh", hdn, params["w2"], precision=P) + params["b2"]
    x2 = ln(x1 + ffn, params["ln2_g"], params["ln2_b"])
    cls = x2[:, 0, :]
    return jnp.einsum("bh,ho->bo", cls, params["wc"], precision=P) + params["bc"]


# ------------------------------ main ------------------------------------------
def make_params(key):
    ks = jax.random.split(key, 12)
    std = 0.02
    return {
        "word_emb": jax.random.normal(ks[0], (VOCAB, H), jnp.float32) * std,
        "pos_emb":  jax.random.normal(ks[1], (S, H), jnp.float32) * std,
        "wq": jax.random.normal(ks[2], (H, H), jnp.float32) * std, "bq": jnp.zeros((1, H), jnp.float32),
        "wk": jax.random.normal(ks[3], (H, H), jnp.float32) * std, "bk": jnp.zeros((1, H), jnp.float32),
        "wv": jax.random.normal(ks[4], (H, H), jnp.float32) * std, "bv": jnp.zeros((1, H), jnp.float32),
        "wo": jax.random.normal(ks[5], (H, H), jnp.float32) * std, "bo": jnp.zeros((1, H), jnp.float32),
        "ln1_g": jnp.ones((1, H), jnp.float32), "ln1_b": jnp.zeros((1, H), jnp.float32),
        "w1": jax.random.normal(ks[6], (H, FF), jnp.float32) * std, "b1": jnp.zeros((1, FF), jnp.float32),
        "w2": jax.random.normal(ks[7], (FF, H), jnp.float32) * std, "b2": jnp.zeros((1, H), jnp.float32),
        "ln2_g": jnp.ones((1, H), jnp.float32), "ln2_b": jnp.zeros((1, H), jnp.float32),
        "wc": jax.random.normal(ks[8], (H, 1), jnp.float32) * std, "bc": jnp.zeros((1, 1), jnp.float32),
    }


if __name__ == "__main__":
    key = jax.random.PRNGKey(0)
    pkey, ikey = jax.random.split(key)
    params = make_params(pkey)

    # TODO(synk): pretrained AutoModel checkpoint load has no in-script
    # equivalent; weights above are deterministic synthetic initializations.
    packed = pack_weights(params)   # one-time bf16 repack, outside the forward path

    input_ids = jax.random.randint(ikey, (B, S), 0, VOCAB, dtype=jnp.int32)
    attention_mask = jnp.ones((B, S), dtype=jnp.int32)

    logits = changepoint_norms_classifier(input_ids, attention_mask, params, packed)
    logits = jax.block_until_ready(logits)

    ref = reference_forward(input_ids, attention_mask, params)
    assert logits.shape == (B, 1)
    # kernel uses bf16 MXU operands (f32 accumulation); exact softmax reciprocal
    assert jnp.allclose(logits, ref, atol=2e-3, rtol=2e-3), (logits, ref)

    print("KERNEL_OK")
</pallas_src>

<mosaic_0001>
module attributes {stable_mosaic.version = 11 : i64} {
  func.func @encoder_cls_kernel(%arg0: memref<16x32xf32, #tpu.memory_space<vmem>>, %arg1: memref<224x128xbf16, #tpu.memory_space<vmem>>, %arg2: memref<20x128xf32, #tpu.memory_space<vmem>>, %arg3: memref<2x1xf32, #tpu.memory_space<vmem>>) attributes {dimension_semantics = [], scalar_prefetch = 0 : i64, scratch_operands = 0 : i64, tpu.core_type = #tpu.core_type<tc>} {
    %c0 = arith.constant 0 : index
    %c0_0 = arith.constant 0 : index
    %0 = vector.load %arg0[%c0, %c0_0] : memref<16x32xf32, #tpu.memory_space<vmem>>, vector<16x32xf32>
    %c0_1 = arith.constant 0 : index
    %c0_2 = arith.constant 0 : index
    %1 = vector.load %arg1[%c0_1, %c0_2] : memref<224x128xbf16, #tpu.memory_space<vmem>>, vector<32x128xbf16>
    %c32 = arith.constant 32 : index
    %c0_3 = arith.constant 0 : index
    %2 = vector.load %arg1[%c32, %c0_3] : memref<224x128xbf16, #tpu.memory_space<vmem>>, vector<32x128xbf16>
    %c64 = arith.constant 64 : index
    %c0_4 = arith.constant 0 : index
    %3 = vector.load %arg1[%c64, %c0_4] : memref<224x128xbf16, #tpu.memory_space<vmem>>, vector<128x128xbf16>
    %c192 = arith.constant 192 : index
    %c0_5 = arith.constant 0 : index
    %4 = vector.load %arg1[%c192, %c0_5] : memref<224x128xbf16, #tpu.memory_space<vmem>>, vector<32x32xbf16>
    %c0_6 = arith.constant 0 : index
    %c0_7 = arith.constant 0 : index
    %5 = vector.load %arg2[%c0_6, %c0_7] : memref<20x128xf32, #tpu.memory_space<vmem>>, vector<1x128xf32>
    %c1 = arith.constant 1 : index
    %c0_8 = arith.constant 0 : index
    %6 = vector.load %arg2[%c1, %c0_8] : memref<20x128xf32, #tpu.memory_space<vmem>>, vector<1x128xf32>
    %c2 = arith.constant 2 : index
    %c0_9 = arith.constant 0 : index
    %7 = vector.load %arg2[%c2, %c0_9] : memref<20x128xf32, #tpu.memory_space<vmem>>, vector<1x32xf32>
    %c2_10 = arith.constant 2 : index
    %c32_11 = arith.constant 32 : index
    %8 = vector.load %arg2[%c2_10, %c32_11] : memref<20x128xf32, #tpu.memory_space<vmem>>, vector<1x32xf32>
    %c2_12 = arith.constant 2 : index
    %c64_13 = arith.constant 64 : index
    %9 = vector.load %arg2[%c2_12, %c64_13] : memref<20x128xf32, #tpu.memory_space<vmem>>, vector<1x32xf32>
    %c2_14 = arith.constant 2 : index
    %c96 = arith.constant 96 : index
    %10 = vector.load %arg2[%c2_14, %c96] : memref<20x128xf32, #tpu.memory_space<vmem>>, vector<1x32xf32>
    %c3 = arith.constant 3 : index
    %c0_15 = arith.constant 0 : index
    %11 = vector.load %arg2[%c3, %c0_15] : memref<20x128xf32, #tpu.memory_space<vmem>>, vector<1x32xf32>
    %c3_16 = arith.constant 3 : index
    %c32_17 = arith.constant 32 : index
    %12 = vector.load %arg2[%c3_16, %c32_17] : memref<20x128xf32, #tpu.memory_space<vmem>>, vector<1x32xf32>
    %c3_18 = arith.constant 3 : index
    %c64_19 = arith.constant 64 : index
    %13 = vector.load %arg2[%c3_18, %c64_19] : memref<20x128xf32, #tpu.memory_space<vmem>>, vector<1x1xf32>
    %c4 = arith.constant 4 : index
    %c0_20 = arith.constant 0 : index
    %14 = vector.load %arg2[%c4, %c0_20] : memref<20x128xf32, #tpu.memory_space<vmem>>, vector<16x1xf32>
    %15 = arith.truncf %0 : vector<16x32xf32> to vector<16x32xbf16>
    %cst = arith.constant dense<0.000000e+00> : vector<16x128xf32>
    %16 = tpu.matmul %15, %1, %cst {dimension_numbers = #tpu.dot_dimension_numbers<[1], [0], [0], [1], [0, 0, 1, 1], [], []>} : vector<16x32xbf16>, vector<32x128xbf16>, vector<16x128xf32> -> vector<16x128xf32>
    %17 = vector.broadcast %5 : vector<1x128xf32> to vector<16x128xf32>
    %18 = arith.addf %16, %17 : vector<16x128xf32>
    %19 = vector.extract_strided_slice %18 {offsets = [0, 0], sizes = [16, 32], strides = [1, 1]} : vector<16x128xf32> to vector<16x32xf32>
    %20 = vector.extract_strided_slice %18 {offsets = [0, 32], sizes = [16, 32], strides = [1, 1]} : vector<16x128xf32> to vector<16x32xf32>
    %21 = vector.extract_strided_slice %18 {offsets = [0, 64], sizes = [16, 32], strides = [1, 1]} : vector<16x128xf32> to vector<16x32xf32>
    %22 = vector.shape_cast %19 : vector<16x32xf32> to vector<2x8x32xf32>
    %23 = vector.extract_strided_slice %22 {offsets = [0, 0, 0], sizes = [2, 1, 32], strides = [1, 1, 1]} : vector<2x8x32xf32> to vector<2x1x32xf32>
    %24 = vector.shape_cast %23 : vector<2x1x32xf32> to vector<2x1x32xf32>
    %25 = vector.broadcast %24 : vector<2x1x32xf32> to vector<2x8x32xf32>
    %26 = vector.shape_cast %25 : vector<2x8x32xf32> to vector<16x32xf32>
    %27 = arith.mulf %20, %26 : vector<16x32xf32>
    %28 = arith.truncf %27 : vector<16x32xf32> to vector<16x32xbf16>
    %cst_21 = arith.constant dense<0.000000e+00> : vector<16x32xf32>
    %29 = tpu.matmul %28, %4, %cst_21 {dimension_numbers = #tpu.dot_dimension_numbers<[1], [0], [0], [1], [0, 0, 1, 1], [], []>} : vector<16x32xbf16>, vector<32x32xbf16>, vector<16x32xf32> -> vector<16x32xf32>
    %cst_22 = arith.constant 0.353553385 : f32
    %30 = vector.broadcast %cst_22 : f32 to vector<16x32xf32>
    %31 = arith.mulf %29, %30 : vector<16x32xf32>
    %32 = vector.broadcast %14 : vector<16x1xf32> to vector<16x32xf32>
    %33 = arith.addf %31, %32 : vector<16x32xf32>
    %34 = vector.shape_cast %33 : vector<16x32xf32> to vector<2x8x32xf32>
    %cst_23 = arith.constant dense<0xFF800000> : vector<2x32xf32>
    %35 = vector.multi_reduction <maximumf>, %34, %cst_23 [1] : vector<2x8x32xf32> to vector<2x32xf32>
    %36 = vector.shape_cast %35 : vector<2x32xf32> to vector<2x1x32xf32>
    %37 = vector.broadcast %36 : vector<2x1x32xf32> to vector<2x8x32xf32>
    %38 = arith.subf %34, %37 : vector<2x8x32xf32>
    %39 = math.exp %38 : vector<2x8x32xf32>
    %cst_24 = arith.constant dense<0.000000e+00> : vector<2x32xf32>
    %40 = vector.multi_reduction <add>, %39, %cst_24 [1] : vector<2x8x32xf32> to vector<2x32xf32>
    %41 = vector.shape_cast %40 : vector<2x32xf32> to vector<2x1x32xf32>
    %42 = tpu.reciprocal %41 : vector<2x1x32xf32> -> vector<2x1x32xf32>
    %43 = vector.broadcast %42 : vector<2x1x32xf32> to vector<2x8x32xf32>
    %44 = arith.mulf %39, %43 : vector<2x8x32xf32>
    %45 = vector.shape_cast %21 : vector<16x32xf32> to vector<2x8x32xf32>
    %46 = arith.mulf %44, %45 : vector<2x8x32xf32>
    %cst_25 = arith.constant dense<0.000000e+00> : vector<2x32xf32>
    %47 = vector.multi_reduction <add>, %46, %cst_25 [1] : vector<2x8x32xf32> to vector<2x32xf32>
    %48 = vector.extract_strided_slice %1 {offsets = [0, 96], sizes = [32, 32], strides = [1, 1]} : vector<32x128xbf16> to vector<32x32xbf16>
    %49 = vector.extract_strided_slice %5 {offsets = [0, 96], sizes = [1, 32], strides = [1, 1]} : vector<1x128xf32> to vector<1x32xf32>
    %50 = arith.truncf %47 : vector<2x32xf32> to vector<2x32xbf16>
    %cst_26 = arith.constant dense<0.000000e+00> : vector<2x32xf32>
    %51 = tpu.matmul %50, %48, %cst_26 {dimension_numbers = #tpu.dot_dimension_numbers<[1], [0], [0], [1], [0, 0, 1, 1], [], []>} : vector<2x32xbf16>, vector<32x32xbf16>, vector<2x32xf32> -> vector<2x32xf32>
    %52 = vector.broadcast %49 : vector<1x32xf32> to vector<2x32xf32>
    %53 = arith.addf %51, %52 : vector<2x32xf32>
    %54 = vector.shape_cast %0 : vector<16x32xf32> to vector<2x8x32xf32>
    %55 = vector.extract_strided_slice %54 {offsets = [0, 0, 0], sizes = [2, 1, 32], strides = [1, 1, 1]} : vector<2x8x32xf32> to vector<2x1x32xf32>
    %56 = vector.shape_cast %55 : vector<2x1x32xf32> to vector<2x32xf32>
    %57 = arith.addf %56, %53 : vector<2x32xf32>
    %cst_27 = arith.constant dense<0.000000e+00> : vector<2xf32>
    %58 = vector.multi_reduction <add>, %57, %cst_27 [1] : vector<2x32xf32> to vector<2xf32>
    %59 = vector.shape_cast %58 : vector<2xf32> to vector<2x1xf32>
    %cst_28 = arith.constant 3.200000e+01 : f32
    %60 = vector.broadcast %cst_28 : f32 to vector<2x1xf32>
    %61 = arith.divf %59, %60 : vector<2x1xf32>
    %62 = vector.broadcast %61 : vector<2x1xf32> to vector<2x32xf32>
    %63 = arith.subf %57, %62 : vector<2x32xf32>
    %64 = arith.mulf %63, %63 : vector<2x32xf32>
    %cst_29 = arith.constant dense<0.000000e+00> : vector<2xf32>
    %65 = vector.multi_reduction <add>, %64, %cst_29 [1] : vector<2x32xf32> to vector<2xf32>
    %66 = vector.shape_cast %65 : vector<2xf32> to vector<2x1xf32>
    %cst_30 = arith.constant 3.200000e+01 : f32
    %67 = vector.broadcast %cst_30 : f32 to vector<2x1xf32>
    %68 = arith.divf %66, %67 : vector<2x1xf32>
    %69 = vector.broadcast %61 : vector<2x1xf32> to vector<2x32xf32>
    %70 = arith.subf %57, %69 : vector<2x32xf32>
    %cst_31 = arith.constant 9.99999996E-13 : f32
    %71 = vector.broadcast %cst_31 : f32 to vector<2x1xf32>
    %72 = arith.addf %68, %71 : vector<2x1xf32>
    %73 = math.rsqrt %72 : vector<2x1xf32>
    %74 = vector.broadcast %73 : vector<2x1xf32> to vector<2x32xf32>
    %75 = arith.mulf %70, %74 : vector<2x32xf32>
    %76 = vector.broadcast %7 : vector<1x32xf32> to vector<2x32xf32>
    %77 = arith.mulf %75, %76 : vector<2x32xf32>
    %78 = vector.broadcast %8 : vector<1x32xf32> to vector<2x32xf32>
    %79 = arith.addf %77, %78 : vector<2x32xf32>
    %80 = arith.truncf %79 : vector<2x32xf32> to vector<2x32xbf16>
    %cst_32 = arith.constant dense<0.000000e+00> : vector<2x128xf32>
    %81 = tpu.matmul %80, %2, %cst_32 {dimension_numbers = #tpu.dot_dimension_numbers<[1], [0], [0], [1], [0, 0, 1, 1], [], []>} : vector<2x32xbf16>, vector<32x128xbf16>, vector<2x128xf32> -> vector<2x128xf32>
    %82 = vector.broadcast %6 : vector<1x128xf32> to vector<2x128xf32>
    %83 = arith.addf %81, %82 : vector<2x128xf32>
    %cst_33 = arith.constant 5.000000e-01 : f32
    %84 = vector.broadcast %cst_33 : f32 to vector<2x128xf32>
    %85 = arith.mulf %84, %83 : vector<2x128xf32>
    %cst_34 = arith.constant 4.471500e-02 : f32
    %86 = vector.broadcast %cst_34 : f32 to vector<2x128xf32>
    %87 = arith.mulf %86, %83 : vector<2x128xf32>
    %88 = arith.mulf %87, %83 : vector<2x128xf32>
    %89 = arith.mulf %88, %83 : vector<2x128xf32>
    %90 = arith.addf %83, %89 : vector<2x128xf32>
    %cst_35 = arith.constant 0.797884583 : f32
    %91 = vector.broadcast %cst_35 : f32 to vector<2x128xf32>
    %92 = arith.mulf %91, %90 : vector<2x128xf32>
    %93 = math.tanh %92 : vector<2x128xf32>
    %cst_36 = arith.constant 1.000000e+00 : f32
    %94 = vector.broadcast %cst_36 : f32 to vector<2x128xf32>
    %95 = arith.addf %94, %93 : vector<2x128xf32>
    %96 = arith.mulf %85, %95 : vector<2x128xf32>
    %97 = arith.truncf %96 : vector<2x128xf32> to vector<2x128xbf16>
    %cst_37 = arith.constant dense<0.000000e+00> : vector<2x128xf32>
    %98 = tpu.matmul %97, %3, %cst_37 {dimension_numbers = #tpu.dot_dimension_numbers<[1], [0], [0], [1], [0, 0, 1, 1], [], []>} : vector<2x128xbf16>, vector<128x128xbf16>, vector<2x128xf32> -> vector<2x128xf32>
    %99 = vector.extract_strided_slice %98 {offsets = [0, 0], sizes = [2, 32], strides = [1, 1]} : vector<2x128xf32> to vector<2x32xf32>
    %100 = vector.broadcast %11 : vector<1x32xf32> to vector<2x32xf32>
    %101 = arith.addf %99, %100 : vector<2x32xf32>
    %102 = arith.addf %79, %101 : vector<2x32xf32>
    %cst_38 = arith.constant dense<0.000000e+00> : vector<2xf32>
    %103 = vector.multi_reduction <add>, %102, %cst_38 [1] : vector<2x32xf32> to vector<2xf32>
    %104 = vector.shape_cast %103 : vector<2xf32> to vector<2x1xf32>
    %cst_39 = arith.constant 3.200000e+01 : f32
    %105 = vector.broadcast %cst_39 : f32 to vector<2x1xf32>
    %106 = arith.divf %104, %105 : vector<2x1xf32>
    %107 = vector.broadcast %106 : vector<2x1xf32> to vector<2x32xf32>
    %108 = arith.subf %102, %107 : vector<2x32xf32>
    %109 = arith.mulf %108, %108 : vector<2x32xf32>
    %cst_40 = arith.constant dense<0.000000e+00> : vector<2xf32>
    %110 = vector.multi_reduction <add>, %109, %cst_40 [1] : vector<2x32xf32> to vector<2xf32>
    %111 = vector.shape_cast %110 : vector<2xf32> to vector<2x1xf32>
    %cst_41 = arith.constant 3.200000e+01 : f32
    %112 = vector.broadcast %cst_41 : f32 to vector<2x1xf32>
    %113 = arith.divf %111, %112 : vector<2x1xf32>
    %114 = vector.broadcast %106 : vector<2x1xf32> to vector<2x32xf32>
    %115 = arith.subf %102, %114 : vector<2x32xf32>
    %cst_42 = arith.constant 9.99999996E-13 : f32
    %116 = vector.broadcast %cst_42 : f32 to vector<2x1xf32>
    %117 = arith.addf %113, %116 : vector<2x1xf32>
    %118 = math.rsqrt %117 : vector<2x1xf32>
    %119 = vector.broadcast %118 : vector<2x1xf32> to vector<2x32xf32>
    %120 = arith.mulf %115, %119 : vector<2x32xf32>
    %121 = vector.broadcast %9 : vector<1x32xf32> to vector<2x32xf32>
    %122 = arith.mulf %120, %121 : vector<2x32xf32>
    %123 = vector.broadcast %10 : vector<1x32xf32> to vector<2x32xf32>
    %124 = arith.addf %122, %123 : vector<2x32xf32>
    %125 = vector.broadcast %12 : vector<1x32xf32> to vector<2x32xf32>
    %126 = arith.mulf %124, %125 : vector<2x32xf32>
    %cst_43 = arith.constant dense<0.000000e+00> : vector<2xf32>
    %127 = vector.multi_reduction <add>, %126, %cst_43 [1] : vector<2x32xf32> to vector<2xf32>
    %128 = vector.shape_cast %127 : vector<2xf32> to vector<2x1xf32>
    %129 = vector.broadcast %13 : vector<1x1xf32> to vector<2x1xf32>
    %130 = arith.addf %128, %129 : vector<2x1xf32>
    %c0_44 = arith.constant 0 : index
    %c0_45 = arith.constant 0 : index
    %131 = vector.load %arg3[%c0_44, %c0_45] : memref<2x1xf32, #tpu.memory_space<vmem>>, vector<2x1xf32>
    tpu.vector_store %arg3[%c0_44, %c0_45], %130 {strides = array<i32>} : memref<2x1xf32, #tpu.memory_space<vmem>>, vector<2x1xf32>,
    return
  }
}

</mosaic_0001>

<llo_original>
// kernel: tpu_custom_call.1
$region0: #{tpu_custom_call.1}
  #allocation0 [shape = 'u32[]', space=smem, size = 0x4, offset = 0x4, fixed_abs, tag = 'smem constant byte address 0x4 - core index']
  #allocation1 [shape = 'u32[144,128]{1,0:T(1,128)}', space=vmem, size = 0x12000, scoped, tag = 'internal scratch']
  %s0 = inlined_call_operand.hbm [shape: f32[16,32], index: 0, kind: input, shape index: {}]
  %s1 = inlined_call_operand.hbm [shape: bf16[224,128], index: 1, kind: input, shape index: {}]
  %s2 = inlined_call_operand.hbm [shape: f32[20,128], index: 2, kind: input, shape index: {}]
  %s3 = inlined_call_operand.vmem [shape: f32[2,1], index: 3, kind: output, shape index: {}]
  %s4 = sld [smem:[#allocation0]]
  $region34: #{tpu_custom_call.1} parent=0
    _
  %s6 = ssub.s32 1, %s4
  %s7 = scalar_select 0, %s6, %s4
  $region1: #{tpu_custom_call.1} parent=0
    #allocation2 [shape = 'u8[8192]{0}', space=vmem, size = 0x2000, scoped, tag = 'input window, operand 0, single buffered']
    #allocation3 [shape = 's32[1]{0}', space=sflag, size = 0x4, scoped, tag = 'scoped memory for tpu_custom_call.1']
    #allocation4 [shape = 'u8[57344]{0}', space=vmem, size = 0xe000, scoped, tag = 'input window, operand 1, single buffered']
    #allocation5 [shape = 's32[1]{0}', space=sflag, size = 0x4, scoped, tag = 'scoped memory for tpu_custom_call.1']
    #allocation6 [shape = 'u8[12288]{0}', space=vmem, size = 0x3000, scoped, tag = 'input window, operand 2, single buffered']
    %8 = vsyncpa [#allocation3], 0
    %9 = vsyncpa [#allocation5], 0
    // Predicated region
    $region2: #{tpu_custom_call.1} parent=1 // pred_check
      _
    $region3: #{tpu_custom_call.1} parent=1 // pred_check_branch
      %11 = sbr.rel (0) target = $region5
    $region4: #{tpu_custom_call.1} parent=1 // pred_region
      %s13 = ssub.s32 256, 256
      %14 = vsyncadd [#allocation3], %s13
      %s15 = sshll.u32 [#allocation2], 4
      %s16 = int_to_ptr.vmem [resolvable:$true] %s15
      %21 = dma.hbm_to_vmem [thread:$0]  %s0, 256, %s16, [#allocation3], 128, 128, 8
    $region5: #{tpu_custom_call.1} parent=1 // pred_fallthru
      _
    // Predicated region
    $region6: #{tpu_custom_call.1} parent=1 // pred_check
      _
    $region7: #{tpu_custom_call.1} parent=1 // pred_check_branch
      %23 = sbr.rel (0) target = $region9
    $region8: #{tpu_custom_call.1} parent=1 // pred_region
      %s25 = ssub.s32 1792, 1792
      %26 = vsyncadd [#allocation5], %s25
      %s27 = sshll.u32 [#allocation4], 4
      %s28 = int_to_ptr.vmem [resolvable:$true] %s27
      %33 = dma.hbm_to_vmem [thread:$0]  %s1, 1792, %s28, [#allocation5], 64, 64, 4
    $region9: #{tpu_custom_call.1} parent=1 // pred_fallthru
      _
    // Predicated region
    $region10: #{tpu_custom_call.1} parent=1 // pred_check
      _
    $region11: #{tpu_custom_call.1} parent=1 // pred_check_branch
      %35 = sbr.rel (0) target = $region13
    $region12: #{tpu_custom_call.1} parent=1 // pred_region
      %s37 = ssub.s32 384, 384
      %38 = vsyncadd [#allocation5], %s37
      %s39 = sshll.u32 [#allocation6], 4
      %s40 = int_to_ptr.vmem [resolvable:$true] %s39
      %45 = dma.hbm_to_vmem [thread:$0]  %s2, 384, %s40, [#allocation5], 128, 128, 8
    $region13: #{tpu_custom_call.1} parent=1 // pred_fallthru
      _
    // Predicated region
    $region14: #{tpu_custom_call.1} parent=1 // pred_check
      _
    $region15: #{tpu_custom_call.1} parent=1 // pred_check_branch
      %47 = sbr.rel (0) target = $region17
    $region16: #{tpu_custom_call.1} parent=1 // pred_region
      %48 = dma.done [#allocation3], 256
    $region17: #{tpu_custom_call.1} parent=1 // pred_fallthru
      _
    // Predicated region
    $region18: #{tpu_custom_call.1} parent=1 // pred_check
      _
    $region19: #{tpu_custom_call.1} parent=1 // pred_check_branch
      %50 = sbr.rel (0) target = $region21
    $region20: #{tpu_custom_call.1} parent=1 // pred_region
      %51 = dma.done [#allocation5], 1792
    $region21: #{tpu_custom_call.1} parent=1 // pred_fallthru
      _
    // Predicated region
    $region22: #{tpu_custom_call.1} parent=1 // pred_check
      _
    $region23: #{tpu_custom_call.1} parent=1 // pred_check_branch
      %53 = sbr.rel (0) target = $region25
    $region24: #{tpu_custom_call.1} parent=1 // pred_region
      %54 = dma.done [#allocation5], 384
    $region25: #{tpu_custom_call.1} parent=1 // pred_fallthru
      _
    %v56 = vld [vmem:[#allocation2] sm:$0xff]
    %v57 = vld [vmem:[#allocation2 + $0x8] sm:$0xff]
    %v58 = vld [vmem:[#allocation4] sm:$0xf]
    %v59 = vld [vmem:[#allocation4 + $0x4] sm:$0xf]
    %v60 = vld [vmem:[#allocation4 + $0x8] sm:$0xf]
    %v61 = vld [vmem:[#allocation4 + $0xc] sm:$0xf]
    %v62 = vld [vmem:[#allocation4 + $0x10] sm:$0xf]
    %v63 = vld [vmem:[#allocation4 + $0x14] sm:$0xf]
    %v64 = vld [vmem:[#allocation4 + $0x18] sm:$0xf]
    %v65 = vld [vmem:[#allocation4 + $0x1c] sm:$0xf]
    %v66 = vld [vmem:[#allocation4 + $0x20] sm:$0xf]
    %v67 = vld [vmem:[#allocation4 + $0x24] sm:$0xf]
    %v68 = vld [vmem:[#allocation4 + $0x28] sm:$0xf]
    %v69 = vld [vmem:[#allocation4 + $0x2c] sm:$0xf]
    %v70 = vld [vmem:[#allocation4 + $0x30] sm:$0xf]
    %v71 = vld [vmem:[#allocation4 + $0x34] sm:$0xf]
    %v72 = vld [vmem:[#allocation4 + $0x38] sm:$0xf]
    %v73 = vld [vmem:[#allocation4 + $0x3c] sm:$0xf]
    %v74 = vld [vmem:[#allocation4 + $0x40] sm:$0xf]
    %v75 = vld [vmem:[#allocation4 + $0x44] sm:$0xf]
    %v76 = vld [vmem:[#allocation4 + $0x48] sm:$0xf]
    %v77 = vld [vmem:[#allocation4 + $0x4c] sm:$0xf]
    %v78 = vld [vmem:[#allocation4 + $0x50] sm:$0xf]
    %v79 = vld [vmem:[#allocation4 + $0x54] sm:$0xf]
    %v80 = vld [vmem:[#allocation4 + $0x58] sm:$0xf]
    %v81 = vld [vmem:[#allocation4 + $0x5c] sm:$0xf]
    %v82 = vld [vmem:[#allocation4 + $0x60] sm:$0xf]
    %v83 = vld [vmem:[#allocation4 + $0x64] sm:$0xf]
    %v84 = vld [vmem:[#allocation4 + $0x68] sm:$0xf]
    %v85 = vld [vmem:[#allocation4 + $0x6c] sm:$0xf]
    %v86 = vld [vmem:[#allocation6] sm:$0x1]
    %v87 = vld [vmem:[#allocation6 + $0x1] sm:$0x1]
    %v88 = vld [vmem:[#allocation6 + $0x2] sm:$0x1]
    %v89 = vld [vmem:[#allocation6 + $0x3] sm:$0x1]
    %v90 = vld [vmem:[#allocation6 + $0x4] sm:$0xff]
    %v91 = vld [vmem:[#allocation6 + $0xc] sm:$0xff]
    %v92 = vpack.c.bf16 %v57, %v56
    %v93 = vlaneseq
    %v94 = vshrl.u32 %v93, 7
    %v95 = vsub.s32 0, %v94
    %v96 = vrot.slane %v86, %v95
    %v101 = vunpack.c.l.b16 %v58
    %v102 = vunpack.c.l.b16 %v59
    %v103 = vunpack.c.l.b16 %v60
    %v104 = vunpack.c.l.b16 %v61
    %v105 = vpack.c.b16 %v102, %v101
    %v106 = vpack.c.b16 %v104, %v103
    %vm109 = vcmask 261120
    %v111 = vsel %vm109, %v92, 0
    %113 = vmatprep.subr.bf16.mxu0 0
    %114 = vmatpush1.bf16.msra.mxu0 %v105
    %115 = vmatprep.subr.bf16.mxu0 0
    %116 = vmatpush1.bf16.msra.mxu0 %v106
    %117 = vmatprep.subr.bf16.mxu0 0
    %118 = vmatpush1.bf16.msra.mxu0 0
    %119 = vmatprep.subr.bf16.mxu0 0
    %120 = vmatpush1.bf16.msra.mxu0 0
    %121 = vmatprep.subr.bf16.mxu0 0
    %122 = vmatpush1.bf16.msra.mxu0 0
    %123 = vmatprep.subr.bf16.mxu0 0
    %124 = vmatpush1.bf16.msra.mxu0 0
    %125 = vmatprep.subr.bf16.mxu0 0
    %126 = vmatpush1.bf16.msra.mxu0 0
    %127 = vmatprep.subr.bf16.mxu0 0
    %128 = vmatpush1.bf16.msra.mxu0 0
    %129 = vmatprep.subr.bf16.mxu0 0
    %130 = vmatpush1.bf16.msra.mxu0 0
    %131 = vmatprep.subr.bf16.mxu0 0
    %132 = vmatpush1.bf16.msra.mxu0 0
    %133 = vmatprep.subr.bf16.mxu0 0
    %134 = vmatpush1.bf16.msra.mxu0 0
    %135 = vmatprep.subr.bf16.mxu0 0
    %136 = vmatpush1.bf16.msra.mxu0 0
    %137 = vmatprep.subr.bf16.mxu0 0
    %138 = vmatpush1.bf16.msra.mxu0 0
    %139 = vmatprep.subr.bf16.mxu0 0
    %140 = vmatpush1.bf16.msra.mxu0 0
    %141 = vmatprep.subr.bf16.mxu0 0
    %142 = vmatpush1.bf16.msra.mxu0 0
    %143 = vmatprep.subr.bf16.mxu0 0
    %144 = vmatpush1.bf16.msra.mxu0 0
    %145 = vmatprep.mubr.bf16.mxu0 0
    %146 = vmatmul.mubr.bf16.gmra.mrb[0].mxu0 %v111
    %v147 = vpop.f32.mrb[0].mxu0
    %v148 = vadd.f32 %v96, %v147
    %v149 = vpop.f32.mrb[0].mxu0
    %v150 = vpop.f32.mrb[0].mxu0
    %v151 = vadd.f32 %v96, %v150
    %v152 = vpop.f32.mrb[0].mxu0
    %153 = vdwg.mxu0
    %v154 = vlaneseq
    %v155 = vshrl.u32 %v154, 7
    %v156 = vsub.s32 0, %v155
    %v157 = vrot.slane %v148, %v156
    %v158 = vlaneseq
    %v159 = vshrl.u32 %v158, 7
    %v160 = vsub.s32 0, %v159
    %v161 = vrot.slane %v151, %v160
    %164 = vrot.lane.b32.xlu0 %v157, 32
    %v165 = vpop.permute.xlu0 %164
    %166 = vrot.lane.b32.xlu0 %v161, 32
    %v167 = vpop.permute.xlu0 %166
    %v170 = vmul.f32 %v148, %v165
    %v171 = vmul.f32 %v151, %v167
    %v172 = vpack.c.bf16 %v171, %v170
    %174 = vrot.lane.b32.xlu0 %v172, 96
    %v175 = vpop.permute.xlu0 %174
    %v180 = vunpack.c.l.b16 %v82
    %v181 = vunpack.c.l.b16 %v83
    %v182 = vunpack.c.l.b16 %v84
    %v183 = vunpack.c.l.b16 %v85
    %v184 = vpack.c.b16 %v181, %v180
    %v185 = vpack.c.b16 %v183, %v182
    %v189 = vsel %vm109, %v175, 0
    %191 = vmatprep.subr.bf16.mxu0 0
    %192 = vmatpush1.bf16.msra.mxu0 %v184
    %193 = vmatprep.subr.bf16.mxu0 0
    %194 = vmatpush1.bf16.msra.mxu0 %v185
    %195 = vmatprep.subr.bf16.mxu0 0
    %196 = vmatpush1.bf16.msra.mxu0 0
    %197 = vmatprep.subr.bf16.mxu0 0
    %198 = vmatpush1.bf16.msra.mxu0 0
    %199 = vmatprep.subr.bf16.mxu0 0
    %200 = vmatpush1.bf16.msra.mxu0 0
    %201 = vmatprep.subr.bf16.mxu0 0
    %202 = vmatpush1.bf16.msra.mxu0 0
    %203 = vmatprep.subr.bf16.mxu0 0
    %204 = vmatpush1.bf16.msra.mxu0 0
    %205 = vmatprep.subr.bf16.mxu0 0
    %206 = vmatpush1.bf16.msra.mxu0 0
    %207 = vmatprep.subr.bf16.mxu0 0
    %208 = vmatpush1.bf16.msra.mxu0 0
    %209 = vmatprep.subr.bf16.mxu0 0
    %210 = vmatpush1.bf16.msra.mxu0 0
    %211 = vmatprep.subr.bf16.mxu0 0
    %212 = vmatpush1.bf16.msra.mxu0 0
    %213 = vmatprep.subr.bf16.mxu0 0
    %214 = vmatpush1.bf16.msra.mxu0 0
    %215 = vmatprep.subr.bf16.mxu0 0
    %216 = vmatpush1.bf16.msra.mxu0 0
    %217 = vmatprep.subr.bf16.mxu0 0
    %218 = vmatpush1.bf16.msra.mxu0 0
    %219 = vmatprep.subr.bf16.mxu0 0
    %220 = vmatpush1.bf16.msra.mxu0 0
    %221 = vmatprep.subr.bf16.mxu0 0
    %222 = vmatpush1.bf16.msra.mxu0 0
    %223 = vmatprep.mubr.bf16.mxu0 0
    %224 = vmatmul.mubr.bf16.gmra.mrb[0].mxu0 %v189
    %v225 = vpop.f32.mrb[0].mxu0
    %v226 = vadd.f32 0.0, %v225
    %v227 = vpop.f32.mrb[0].mxu0
    %v228 = vpop.f32.mrb[0].mxu0
    %v229 = vadd.f32 0.0, %v228
    %v230 = vpop.f32.mrb[0].mxu0
    %231 = vdwg.mxu0
    %v232 = vmul.f32 %v226, 0.35355338
    %v233 = vmul.f32 %v229, 0.35355338
    %235 = vset.pattern.permute.xlu0 0
    %236 = vperm.xlu0 %235, %v90
    %v237 = vpop.permute.xlu0 %236
    %240 = vset.pattern.permute.xlu0 0
    %241 = vperm.xlu0 %240, %v91
    %v242 = vpop.permute.xlu0 %241
    %v244 = vadd.f32 %v232, %v237
    %v245 = vadd.f32 %v233, %v242
    %v246 = vsel %vm109, %v244, -inf
    %v247 = vrot.slane %v246, 4
    %v248 = vmax.f32 %v246, %v247
    %v249 = vrot.slane %v248, 2
    %v250 = vmax.f32 %v248, %v249
    %v251 = vrot.slane %v250, 1
    %v252 = vmax.f32 %v250, %v251
    %v253 = vsel %vm109, %v245, -inf
    %v254 = vrot.slane %v253, 4
    %v255 = vmax.f32 %v253, %v254
    %v256 = vrot.slane %v255, 2
    %v257 = vmax.f32 %v255, %v256
    %v258 = vrot.slane %v257, 1
    %v259 = vmax.f32 %v257, %v258
    %v260 = vsub.f32 %v244, %v252
    %v261 = vsub.f32 %v245, %v259
    %v262 = vmul.f32 %v260, 1.442695
    %v263 = vpow.pop %v262
    %v264 = vmul.f32 %v261, 1.442695
    %v265 = vpow.pop %v264
    %v266 = vsel %vm109, %v263, 0.0
    %v267 = vrot.slane %v266, 4
    %v268 = vadd.f32 %v266, %v267
    %v269 = vrot.slane %v268, 2
    %v270 = vadd.f32 %v268, %v269
    %v271 = vrot.slane %v270, 1
    %v272 = vadd.f32 %v270, %v271
    %v273 = vsel %vm109, %v265, 0.0
    %v274 = vrot.slane %v273, 4
    %v275 = vadd.f32 %v273, %v274
    %v276 = vrot.slane %v275, 2
    %v277 = vadd.f32 %v275, %v276
    %v278 = vrot.slane %v277, 1
    %v279 = vadd.f32 %v277, %v278
    %v280 = vrcp.pop %v272
    %v281 = vrcp.pop %v279
    %v282 = vmul.f32 %v263, %v280
    %v283 = vmul.f32 %v265, %v281
    %286 = vrot.lane.b32.xlu0 %v148, 64
    %v287 = vpop.permute.xlu0 %286
    %288 = vrot.lane.b32.xlu0 %v151, 64
    %v289 = vpop.permute.xlu0 %288
    %v292 = vmul.f32 %v282, %v287
    %v293 = vmul.f32 %v283, %v289
    %v294 = vsel %vm109, %v292, 0.0
    %v295 = vrot.slane %v294, 4
    %v296 = vadd.f32 %v294, %v295
    %v297 = vrot.slane %v296, 2
    %v298 = vadd.f32 %v296, %v297
    %v299 = vrot.slane %v298, 1
    %v300 = vadd.f32 %v298, %v299
    %v301 = vsel %vm109, %v293, 0.0
    %v302 = vrot.slane %v301, 4
    %v303 = vadd.f32 %v301, %v302
    %v304 = vrot.slane %v303, 2
    %v305 = vadd.f32 %v303, %v304
    %v306 = vrot.slane %v305, 1
    %v307 = vadd.f32 %v305, %v306
    %v308 = vpack.c.bf16 %v300, %v300
    %v309 = vpack.c.bf16 %v307, %v307
    %v312 = vunpack.c.l.b16 %v308
    %v313 = vunpack.c.l.b16 %v309
    %vm314 = vcmask 1041409
    %v315 = vsel %vm314, %v313, %v312
    %v316 = vpack.c.b16 %v315, %v315
    %317 = vrot.lane.b32.xlu0 %v105, 32
    %v318 = vpop.permute.xlu0 %317
    %319 = vrot.lane.b32.xlu0 %v106, 32
    %v320 = vpop.permute.xlu0 %319
    %324 = vrot.lane.b32.xlu0 %v96, 32
    %v325 = vpop.permute.xlu0 %324
    %v328 = vsel %vm109, %v316, 0
    %330 = vmatprep.subr.bf16.mxu0 0
    %331 = vmatpush1.bf16.msra.mxu0 %v318
    %332 = vmatprep.subr.bf16.mxu0 0
    %333 = vmatpush1.bf16.msra.mxu0 %v320
    %334 = vmatprep.subr.bf16.mxu0 0
    %335 = vmatpush1.bf16.msra.mxu0 0
    %336 = vmatprep.subr.bf16.mxu0 0
    %337 = vmatpush1.bf16.msra.mxu0 0
    %338 = vmatprep.subr.bf16.mxu0 0
    %339 = vmatpush1.bf16.msra.mxu0 0
    %340 = vmatprep.subr.bf16.mxu0 0
    %341 = vmatpush1.bf16.msra.mxu0 0
    %342 = vmatprep.subr.bf16.mxu0 0
    %343 = vmatpush1.bf16.msra.mxu0 0
    %344 = vmatprep.subr.bf16.mxu0 0
    %345 = vmatpush1.bf16.msra.mxu0 0
    %346 = vmatprep.subr.bf16.mxu0 0
    %347 = vmatpush1.bf16.msra.mxu0 0
    %348 = vmatprep.subr.bf16.mxu0 0
    %349 = vmatpush1.bf16.msra.mxu0 0
    %350 = vmatprep.subr.bf16.mxu0 0
    %351 = vmatpush1.bf16.msra.mxu0 0
    %352 = vmatprep.subr.bf16.mxu0 0
    %353 = vmatpush1.bf16.msra.mxu0 0
    %354 = vmatprep.subr.bf16.mxu0 0
    %355 = vmatpush1.bf16.msra.mxu0 0
    %356 = vmatprep.subr.bf16.mxu0 0
    %357 = vmatpush1.bf16.msra.mxu0 0
    %358 = vmatprep.subr.bf16.mxu0 0
    %359 = vmatpush1.bf16.msra.mxu0 0
    %360 = vmatprep.subr.bf16.mxu0 0
    %361 = vmatpush1.bf16.msra.mxu0 0
    %362 = vmatprep.mubr.bf16.mxu0 0
    %363 = vmatmul.mubr.bf16.gmra.mrb[0].mxu0 %v328
    %v364 = vpop.f32.mrb[0].mxu0
    %v365 = vadd.f32 %v325, %v364
    %v366 = vpop.f32.mrb[0].mxu0
    %v367 = vpop.f32.mrb[0].mxu0
    %v368 = vpop.f32.mrb[0].mxu0
    %369 = vdwg.mxu0
    %v371 = vrot.slane %v365, 1
    %v374 = vadd.f32 %v56, %v365
    %v375 = vadd.f32 %v57, %v371
    %v378 = vrot.slane %v375, 7
    %v379 = vsel %vm314, %v378, %v374
    %vm381 = vcmask 254976
    %v382 = vsel %vm381, %v379, 0.0
    %383 = vadd.xlane.f32.xlu0 %v382
    %v384 = vpop.xlane.xlu0 %383
    %v385 = vrcp.pop 32.0
    %v386 = vmul.f32 %v384, %v385
    %v388 = vrot.slane %v386, 1
    %v391 = vsub.f32 %v374, %v386
    %v392 = vsub.f32 %v375, %v388
    %v393 = vmul.f32 %v391, %v391
    %v394 = vmul.f32 %v392, %v392
    %v397 = vrot.slane %v394, 7
    %v398 = vsel %vm314, %v397, %v393
    %v400 = vsel %vm381, %v398, 0.0
    %401 = vadd.xlane.f32.xlu0 %v400
    %v402 = vpop.xlane.xlu0 %401
    %v403 = vmul.f32 %v402, %v385
    %v404 = vadd.f32 %v403, 1e-12
    %v405 = vrsqrt.pop %v404
    %v407 = vrot.slane %v405, 1
    %v410 = vmul.f32 %v391, %v405
    %v411 = vmul.f32 %v392, %v407
    %v412 = vlaneseq
    %v413 = vshrl.u32 %v412, 7
    %v414 = vsub.s32 0, %v413
    %v415 = vrot.slane %v88, %v414
    %v416 = vmul.f32 %v410, %v415
    %v417 = vmul.f32 %v411, %v415
    %419 = vrot.lane.b32.xlu0 %v415, 96
    %v420 = vpop.permute.xlu0 %419
    %v422 = vadd.f32 %v416, %v420
    %v423 = vadd.f32 %v417, %v420
    %v424 = vpack.c.bf16 %v422, %v422
    %v425 = vpack.c.bf16 %v423, %v423
    %v426 = vlaneseq
    %v427 = vshrl.u32 %v426, 7
    %v428 = vsub.s32 0, %v427
    %v429 = vrot.slane %v87, %v428
    %v432 = vunpack.c.l.b16 %v424
    %v433 = vunpack.c.l.b16 %v425
    %v434 = vrot.slane %v433, 7
    %v435 = vsel %vm314, %v434, %v432
    %v436 = vpack.c.b16 %v435, %v435
    %v441 = vunpack.c.l.b16 %v62
    %v442 = vunpack.c.l.b16 %v63
    %v443 = vunpack.c.l.b16 %v64
    %v444 = vunpack.c.l.b16 %v65
    %v445 = vpack.c.b16 %v442, %v441
    %v446 = vpack.c.b16 %v444, %v443
    %v450 = vsel %vm109, %v436, 0
    %452 = vmatprep.subr.bf16.mxu0 0
    %453 = vmatpush1.bf16.msra.mxu0 %v445
    %454 = vmatprep.subr.bf16.mxu0 0
    %455 = vmatpush1.bf16.msra.mxu0 %v446
    %456 = vmatprep.subr.bf16.mxu0 0
    %457 = vmatpush1.bf16.msra.mxu0 0
    %458 = vmatprep.subr.bf16.mxu0 0
    %459 = vmatpush1.bf16.msra.mxu0 0
    %460 = vmatprep.subr.bf16.mxu0 0
    %461 = vmatpush1.bf16.msra.mxu0 0
    %462 = vmatprep.subr.bf16.mxu0 0
    %463 = vmatpush1.bf16.msra.mxu0 0
    %464 = vmatprep.subr.bf16.mxu0 0
    %465 = vmatpush1.bf16.msra.mxu0 0
    %466 = vmatprep.subr.bf16.mxu0 0
    %467 = vmatpush1.bf16.msra.mxu0 0
    %468 = vmatprep.subr.bf16.mxu0 0
    %469 = vmatpush1.bf16.msra.mxu0 0
    %470 = vmatprep.subr.bf16.mxu0 0
    %471 = vmatpush1.bf16.msra.mxu0 0
    %472 = vmatprep.subr.bf16.mxu0 0
    %473 = vmatpush1.bf16.msra.mxu0 0
    %474 = vmatprep.subr.bf16.mxu0 0
    %475 = vmatpush1.bf16.msra.mxu0 0
    %476 = vmatprep.subr.bf16.mxu0 0
    %477 = vmatpush1.bf16.msra.mxu0 0
    %478 = vmatprep.subr.bf16.mxu0 0
    %479 = vmatpush1.bf16.msra.mxu0 0
    %480 = vmatprep.subr.bf16.mxu0 0
    %481 = vmatpush1.bf16.msra.mxu0 0
    %482 = vmatprep.subr.bf16.mxu0 0
    %483 = vmatpush1.bf16.msra.mxu0 0
    %484 = vmatprep.mubr.bf16.mxu0 0
    %485 = vmatmul.mubr.bf16.gmra.mrb[0].mxu0 %v450
    %v486 = vpop.f32.mrb[0].mxu0
    %v487 = vadd.f32 %v429, %v486
    %v488 = vpop.f32.mrb[0].mxu0
    %v489 = vpop.f32.mrb[0].mxu0
    %v490 = vpop.f32.mrb[0].mxu0
    %491 = vdwg.mxu0
    %v492 = vmul.f32 %v487, 0.5
    %v493 = vmul.f32 %v487, 0.044715
    %v494 = vmul.f32 %v493, %v487
    %v495 = vmul.f32 %v494, %v487
    %v496 = vadd.f32 %v487, %v495
    %v497 = vmul.f32 %v496, 0.7978846
    %v498 = vtanh.pop %v497
    %v499 = vadd.f32 %v498, 1.0
    %v500 = vmul.f32 %v492, %v499
    %v501 = vpack.c.bf16 %v500, %v500
    %v518 = vunpack.c.l.b16 %v66
    %v519 = vunpack.c.l.b16 %v67
    %v520 = vunpack.c.l.b16 %v68
    %v521 = vunpack.c.l.b16 %v69
    %v522 = vunpack.c.l.b16 %v70
    %v523 = vunpack.c.l.b16 %v71
    %v524 = vunpack.c.l.b16 %v72
    %v525 = vunpack.c.l.b16 %v73
    %v526 = vunpack.c.l.b16 %v74
    %v527 = vunpack.c.l.b16 %v75
    %v528 = vunpack.c.l.b16 %v76
    %v529 = vunpack.c.l.b16 %v77
    %v530 = vunpack.c.l.b16 %v78
    %v531 = vunpack.c.l.b16 %v79
    %v532 = vunpack.c.l.b16 %v80
    %v533 = vunpack.c.l.b16 %v81
    %v534 = vpack.c.b16 %v519, %v518
    %v535 = vpack.c.b16 %v521, %v520
    %v536 = vpack.c.b16 %v523, %v522
    %v537 = vpack.c.b16 %v525, %v524
    %v538 = vpack.c.b16 %v527, %v526
    %v539 = vpack.c.b16 %v529, %v528
    %v540 = vpack.c.b16 %v531, %v530
    %v541 = vpack.c.b16 %v533, %v532
    %550 = vmatprep.subr.bf16.mxu0 0
    %551 = vmatpush1.bf16.msra.mxu0 %v534
    %552 = vmatprep.subr.bf16.mxu0 0
    %553 = vmatpush1.bf16.msra.mxu0 %v535
    %554 = vmatprep.subr.bf16.mxu0 0
    %555 = vmatpush1.bf16.msra.mxu0 %v536
    %556 = vmatprep.subr.bf16.mxu0 0
    %557 = vmatpush1.bf16.msra.mxu0 %v537
    %558 = vmatprep.subr.bf16.mxu0 0
    %559 = vmatpush1.bf16.msra.mxu0 %v538
    %560 = vmatprep.subr.bf16.mxu0 0
    %561 = vmatpush1.bf16.msra.mxu0 %v539
    %562 = vmatprep.subr.bf16.mxu0 0
    %563 = vmatpush1.bf16.msra.mxu0 %v540
    %564 = vmatprep.subr.bf16.mxu0 0
    %565 = vmatpush1.bf16.msra.mxu0 %v541
    %566 = vmatprep.subr.bf16.mxu0 0
    %567 = vmatpush1.bf16.msra.mxu0 0
    %568 = vmatprep.subr.bf16.mxu0 0
    %569 = vmatpush1.bf16.msra.mxu0 0
    %570 = vmatprep.subr.bf16.mxu0 0
    %571 = vmatpush1.bf16.msra.mxu0 0
    %572 = vmatprep.subr.bf16.mxu0 0
    %573 = vmatpush1.bf16.msra.mxu0 0
    %574 = vmatprep.subr.bf16.mxu0 0
    %575 = vmatpush1.bf16.msra.mxu0 0
    %576 = vmatprep.subr.bf16.mxu0 0
    %577 = vmatpush1.bf16.msra.mxu0 0
    %578 = vmatprep.subr.bf16.mxu0 0
    %579 = vmatpush1.bf16.msra.mxu0 0
    %580 = vmatprep.subr.bf16.mxu0 0
    %581 = vmatpush1.bf16.msra.mxu0 0
    %582 = vmatprep.mubr.bf16.mxu0 0
    %583 = vmatmul.mubr.bf16.gmra.mrb[0].mxu0 %v501
    %v584 = vpop.f32.mrb[0].mxu0
    %v585 = vadd.f32 0.0, %v584
    %v586 = vpop.f32.mrb[0].mxu0
    %v587 = vpop.f32.mrb[0].mxu0
    %v588 = vpop.f32.mrb[0].mxu0
    %589 = vdwg.mxu0
    %v590 = vlaneseq
    %v591 = vshrl.u32 %v590, 7
    %v592 = vsub.s32 0, %v591
    %v593 = vrot.slane %v89, %v592
    %v594 = vadd.f32 %v585, %v593
    %v596 = vrot.slane %v594, 1
    %v599 = vadd.f32 %v422, %v594
    %v600 = vadd.f32 %v423, %v596
    %v603 = vrot.slane %v600, 7
    %v604 = vsel %vm314, %v603, %v599
    %v606 = vsel %vm381, %v604, 0.0
    %607 = vadd.xlane.f32.xlu0 %v606
    %v608 = vpop.xlane.xlu0 %607
    %v609 = vmul.f32 %v608, %v385
    %v611 = vrot.slane %v609, 1
    %v614 = vsub.f32 %v599, %v609
    %v615 = vsub.f32 %v600, %v611
    %v616 = vmul.f32 %v614, %v614
    %v617 = vmul.f32 %v615, %v615
    %v620 = vrot.slane %v617, 7
    %v621 = vsel %vm314, %v620, %v616
    %v623 = vsel %vm381, %v621, 0.0
    %624 = vadd.xlane.f32.xlu0 %v623
    %v625 = vpop.xlane.xlu0 %624
    %v626 = vmul.f32 %v625, %v385
    %v627 = vadd.f32 %v626, 1e-12
    %v628 = vrsqrt.pop %v627
    %v630 = vrot.slane %v628, 1
    %v633 = vmul.f32 %v614, %v628
    %v634 = vmul.f32 %v615, %v630
    %635 = vrot.lane.b32.xlu0 %v415, 64
    %v636 = vpop.permute.xlu0 %635
    %v638 = vmul.f32 %v633, %v636
    %v639 = vmul.f32 %v634, %v636
    %640 = vrot.lane.b32.xlu0 %v415, 32
    %v641 = vpop.permute.xlu0 %640
    %v643 = vadd.f32 %v638, %v641
    %v644 = vadd.f32 %v639, %v641
    %646 = vrot.lane.b32.xlu0 %v593, 96
    %v647 = vpop.permute.xlu0 %646
    %v649 = vmul.f32 %v643, %v647
    %v650 = vmul.f32 %v644, %v647
    %v653 = vrot.slane %v650, 7
    %v654 = vsel %vm314, %v653, %v649
    %v656 = vsel %vm381, %v654, 0.0
    %657 = vadd.xlane.f32.xlu0 %v656
    %v658 = vpop.xlane.xlu0 %657
    %v659 = vadd.f32 %v658, %v593
    %661 = vrot.lane.b32.xlu0 %v659, 64
    %v662 = vpop.permute.xlu0 %661
    %vm664 = vcmask 1024
    %665 = vst.msk [vmem:[%s3] sm:$0x3] %vm664, %v662
    // Predicated region
    $region26: #{tpu_custom_call.1} parent=1 // pred_check
      _
    $region27: #{tpu_custom_call.1} parent=1 // pred_check_branch
      %667 = sbr.rel (0) target = $region29
    $region28: #{tpu_custom_call.1} parent=1 // pred_region
      _
    $region29: #{tpu_custom_call.1} parent=1 // pred_fallthru
      _
    // Predicated region
    $region30: #{tpu_custom_call.1} parent=1 // pred_check
      _
    $region31: #{tpu_custom_call.1} parent=1 // pred_check_branch
      %669 = sbr.rel (0) target = $region33
    $region32: #{tpu_custom_call.1} parent=1 // pred_region
      _
    $region33: #{tpu_custom_call.1} parent=1 // pred_fallthru
      _
    %670 = vsyncpa [#allocation3], 1
    %671 = vsyncpa [#allocation5], 1

</llo_original>
